<compile_context>
chip_gen: v7x
topology: tpu7x:2x2x1
jax: 0.10.0
libtpu: 0.0.40
codegen_flags: <defaults>
</compile_context>

<pallas_src>
import math
import jax
import jax.numpy as jnp
from jax.experimental import pallas as pl
from jax.experimental.pallas import tpu as pltpu


# ----------------------- fixed sin/cos embedding table -----------------------
def _fixed_embedding_table(c_in, d_model):
    """Replicates CAT_FixedEmbedding's frozen weight of shape (c_in, d_model)."""
    pos = jnp.arange(c_in, dtype=jnp.float32)[:, None]
    div = jnp.exp(
        jnp.arange(0, d_model, 2, dtype=jnp.float32) * (-(math.log(10000.0) / d_model))
    )
    ang = pos * div                                    # (c_in, ceil(d/2))
    tab = jnp.zeros((c_in, d_model), jnp.float32)
    tab = tab.at[:, 0::2].set(jnp.sin(ang))
    tab = tab.at[:, 1::2].set(jnp.cos(ang)[:, : d_model // 2])
    return tab


# --------------------------------- kernel ------------------------------------
def temporal_kernel(idx_ref, tabT_ref, o_ref):
    # idx_ref : (4, TN) int32  — indices into the combined vocab (pre-offset)
    # tabT_ref: (D, V)  f32    — combined embedding table, transposed
    # o_ref   : (D, TN) f32    — output tile, already in final (D, B*L) layout
    idx = idx_ref[...]                                          # (4, TN)
    V = tabT_ref.shape[1]
    TN = idx.shape[1]

    # Multi-hot (V, TN): column n has a 1 at each of its 4 (disjoint) vocab ids.
    iota = jax.lax.broadcasted_iota(jnp.int32, (V, TN), 0)
    onehot = (
        (iota == idx[0:1, :]).astype(jnp.float32)
        + (iota == idx[1:2, :]).astype(jnp.float32)
        + (iota == idx[2:3, :]).astype(jnp.float32)
        + (iota == idx[3:4, :]).astype(jnp.float32)
    )

    # Sum of the four gathered embedding rows, done as one MXU contraction.
    o_ref[...] = jnp.dot(
        tabT_ref[...], onehot, preferred_element_type=jnp.float32
    )


# -------------------------------- wrapper ------------------------------------
def _pick_tile(n, max_tile=2048):
    """Largest lane-aligned tile dividing n (whole n if it already fits)."""
    if n <= max_tile:
        return n
    for t in range(max_tile, 127, -128):
        if n % t == 0:
            return t
    return n


def cat_temporal_embedding(x_mark, tables):
    """x_mark: (B, L, >=4) int time features [month, day, weekday, hour].
    tables: (hour_tab, weekday_tab, day_tab, month_tab), each (size, D) f32.
    Returns (D, B, L) f32, matching CAT_TemporalEmbedding.forward."""
    B, L, _ = x_mark.shape
    hour_tab, weekday_tab, day_tab, month_tab = tables
    D = hour_tab.shape[1]

    # Combined vocabulary: hour[0:24], weekday[24:31], day[31:63], month[63:76]
    tab = jnp.concatenate([hour_tab, weekday_tab, day_tab, month_tab], axis=0)
    tabT = jnp.transpose(tab, (1, 0))                           # (D, V)
    V = tab.shape[0]
    offs = (0, 24, 31, 63)

    N = B * L
    xm = x_mark.astype(jnp.int32)
    idx = jnp.stack(
        [
            xm[:, :, 3].reshape(N) + offs[0],                   # hour
            xm[:, :, 2].reshape(N) + offs[1],                   # weekday
            xm[:, :, 1].reshape(N) + offs[2],                   # day
            xm[:, :, 0].reshape(N) + offs[3],                   # month
        ],
        axis=0,
    )                                                           # (4, N) int32

    TN = _pick_tile(N)
    n_tiles = N // TN

    out = pl.pallas_call(
        temporal_kernel,
        out_shape=jax.ShapeDtypeStruct((D, N), jnp.float32),
        grid=(n_tiles,),
        in_specs=[
            pl.BlockSpec((4, TN), lambda j: (0, j)),
            pl.BlockSpec((D, V), lambda j: (0, 0)),
        ],
        out_specs=pl.BlockSpec((D, TN), lambda j: (0, j)),
        compiler_params=pltpu.CompilerParams(
            dimension_semantics=("parallel",),
        ),
    )(idx, tabT)

    # Free reshape: row-major (D, B*L) is already (D, B, L).
    return out.reshape(D, B, L)


# ---------------------------- pure-JAX reference ------------------------------
def ref_forward(x_mark, tables):
    hour_tab, weekday_tab, day_tab, month_tab = tables
    xm = x_mark.astype(jnp.int32)
    temp = (
        hour_tab[xm[:, :, 3]]
        + weekday_tab[xm[:, :, 2]]
        + day_tab[xm[:, :, 1]]
        + month_tab[xm[:, :, 0]]
    )                                                           # (B, L, D)
    return jnp.transpose(temp, (2, 0, 1))                       # (D, B, L)


# ----------------------------------- main -------------------------------------
if __name__ == "__main__":
    B, L, D = 2, 8, 10

    key = jax.random.PRNGKey(0)
    k1, k2, k3, k4 = jax.random.split(key, 4)
    x_mark = jnp.stack(
        [
            jax.random.randint(k1, (B, L), 0, 13),   # month
            jax.random.randint(k2, (B, L), 0, 32),   # day
            jax.random.randint(k3, (B, L), 0, 7),    # weekday
            jax.random.randint(k4, (B, L), 0, 24),   # hour
        ],
        axis=-1,
    ).astype(jnp.int32)

    tables = (
        _fixed_embedding_table(24, D),   # hour
        _fixed_embedding_table(7, D),    # weekday
        _fixed_embedding_table(32, D),   # day
        _fixed_embedding_table(13, D),   # month
    )

    out = cat_temporal_embedding(x_mark, tables)
    out = jax.block_until_ready(out)

    ref = ref_forward(x_mark, tables)
    assert out.shape == (D, B, L), out.shape
    assert jnp.allclose(out, ref, atol=1e-5, rtol=1e-5), "mismatch vs reference"

    print("KERNEL_OK")
</pallas_src>

<mosaic_0001>
module attributes {stable_mosaic.version = 11 : i64} {
  func.func @temporal_kernel(%arg0: i32, %arg1: memref<4x16xi32, #tpu.memory_space<vmem>>, %arg2: memref<10x76xf32, #tpu.memory_space<vmem>>, %arg3: memref<10x16xf32, #tpu.memory_space<vmem>>) attributes {dimension_semantics = [#tpu.dimension_semantics<parallel>], iteration_bounds = array<i64: 1>, scalar_prefetch = 0 : i64, scratch_operands = 0 : i64, tpu.core_type = #tpu.core_type<tc>, window_params = [{transform_indices = @transform_0, window_bounds = array<i64: 4, 16>}, {pipeline_mode = #tpu.pipeline_mode<synchronous>, transform_indices = @transform_1, window_bounds = array<i64: 10, 76>}, {transform_indices = @transform_2, window_bounds = array<i64: 10, 16>}]} {
    %c0 = arith.constant 0 : index
    %c0_0 = arith.constant 0 : index
    %0 = vector.load %arg1[%c0, %c0_0] : memref<4x16xi32, #tpu.memory_space<vmem>>, vector<4x16xi32>
    %1 = tpu.iota {dimensions = array<i32: 0>} : vector<76x16xi32>
    %2 = vector.extract_strided_slice %0 {offsets = [0, 0], sizes = [1, 16], strides = [1, 1]} : vector<4x16xi32> to vector<1x16xi32>
    %3 = vector.broadcast %2 : vector<1x16xi32> to vector<76x16xi32>
    %4 = arith.cmpi eq, %1, %3 : vector<76x16xi32>
    %5 = arith.extui %4 : vector<76x16xi1> to vector<76x16xi32>
    %6 = arith.sitofp %5 : vector<76x16xi32> to vector<76x16xf32>
    %7 = vector.extract_strided_slice %0 {offsets = [1, 0], sizes = [1, 16], strides = [1, 1]} : vector<4x16xi32> to vector<1x16xi32>
    %8 = vector.broadcast %7 : vector<1x16xi32> to vector<76x16xi32>
    %9 = arith.cmpi eq, %1, %8 : vector<76x16xi32>
    %10 = arith.extui %9 : vector<76x16xi1> to vector<76x16xi32>
    %11 = arith.sitofp %10 : vector<76x16xi32> to vector<76x16xf32>
    %12 = arith.addf %6, %11 : vector<76x16xf32>
    %13 = vector.extract_strided_slice %0 {offsets = [2, 0], sizes = [1, 16], strides = [1, 1]} : vector<4x16xi32> to vector<1x16xi32>
    %14 = vector.broadcast %13 : vector<1x16xi32> to vector<76x16xi32>
    %15 = arith.cmpi eq, %1, %14 : vector<76x16xi32>
    %16 = arith.extui %15 : vector<76x16xi1> to vector<76x16xi32>
    %17 = arith.sitofp %16 : vector<76x16xi32> to vector<76x16xf32>
    %18 = arith.addf %12, %17 : vector<76x16xf32>
    %19 = vector.extract_strided_slice %0 {offsets = [3, 0], sizes = [1, 16], strides = [1, 1]} : vector<4x16xi32> to vector<1x16xi32>
    %20 = vector.broadcast %19 : vector<1x16xi32> to vector<76x16xi32>
    %21 = arith.cmpi eq, %1, %20 : vector<76x16xi32>
    %22 = arith.extui %21 : vector<76x16xi1> to vector<76x16xi32>
    %23 = arith.sitofp %22 : vector<76x16xi32> to vector<76x16xf32>
    %24 = arith.addf %18, %23 : vector<76x16xf32>
    %c0_1 = arith.constant 0 : index
    %c0_2 = arith.constant 0 : index
    %25 = vector.load %arg2[%c0_1, %c0_2] : memref<10x76xf32, #tpu.memory_space<vmem>>, vector<10x76xf32>
    %cst = arith.constant dense<0.000000e+00> : vector<10x16xf32>
    %26 = tpu.matmul %25, %24, %cst {dimension_numbers = #tpu.dot_dimension_numbers<[1], [0], [0], [1], [0, 0, 1, 1], [], []>} : vector<10x76xf32>, vector<76x16xf32>, vector<10x16xf32> -> vector<10x16xf32>
    %c0_3 = arith.constant 0 : index
    %c0_4 = arith.constant 0 : index
    %27 = vector.load %arg3[%c0_3, %c0_4] : memref<10x16xf32, #tpu.memory_space<vmem>>, vector<10x16xf32>
    tpu.vector_store %arg3[%c0_3, %c0_4], %26 {strides = array<i32>} : memref<10x16xf32, #tpu.memory_space<vmem>>, vector<10x16xf32>,
    return
  }
  func.func @transform_0(%arg0: i32) -> (i32, i32) {
    %c0_i32 = arith.constant 0 : i32
    %c0_i32_0 = arith.constant 0 : i32
    return %c0_i32, %arg0 : i32, i32
  }
  func.func @transform_1(%arg0: i32) -> (i32, i32) {
    %c0_i32 = arith.constant 0 : i32
    %c0_i32_0 = arith.constant 0 : i32
    %c0_i32_1 = arith.constant 0 : i32
    return %c0_i32, %c0_i32_0 : i32, i32
  }
  func.func @transform_2(%arg0: i32) -> (i32, i32) {
    %c0_i32 = arith.constant 0 : i32
    %c0_i32_0 = arith.constant 0 : i32
    return %c0_i32, %arg0 : i32, i32
  }
}

</mosaic_0001>

<llo_original>
// kernel: tpu_custom_call.1
$region0: #{tpu_custom_call.1}
  #allocation0 [shape = 'u32[]', space=smem, size = 0x4, offset = 0x4, fixed_abs, tag = 'smem constant byte address 0x4 - core index']
  #allocation1 [shape = 'u32[144,128]{1,0:T(1,128)}', space=vmem, size = 0x12000, scoped, tag = 'internal scratch']
  %s0 = inlined_call_operand.hbm [shape: s32[4,16], index: 0, kind: input, shape index: {}]
  %s1 = inlined_call_operand.hbm [shape: f32[10,76], index: 1, kind: input, shape index: {}]
  %s2 = inlined_call_operand.hbm [shape: f32[10,16], index: 2, kind: output, shape index: {}]
  %s3 = sld [smem:[#allocation0]]
  $region26: #{tpu_custom_call.1} parent=0
    _
  %s5 = ssub.s32 1, %s3
  %s6 = scalar_select 0, %s5, %s3
  $region1: #{tpu_custom_call.1} parent=0
    #allocation2 [shape = 'u8[2048]{0}', space=vmem, size = 0x800, scoped, tag = 'input window, operand 0, single buffered']
    #allocation3 [shape = 's32[1]{0}', space=sflag, size = 0x4, scoped, tag = 'scoped memory for tpu_custom_call.1']
    #allocation4 [shape = 's32[1]{0}', space=sflag, size = 0x4, scoped, tag = 'scoped memory for tpu_custom_call.1']
    #allocation5 [shape = 'u8[8192]{0}', space=vmem, size = 0x2000, scoped, tag = 'input window, operand 1, single buffered']
    #allocation6 [shape = 's32[1]{0}', space=sflag, size = 0x4, scoped, tag = 'scoped memory for tpu_custom_call.1']
    #allocation7 [shape = 'u8[8192]{0}', space=vmem, size = 0x2000, scoped, tag = 'output window, operand 0, single buffered']
    %7 = vsyncpa [#allocation3], 0
    %8 = vsyncpa [#allocation6], 0
    %9 = vsyncpa [#allocation4], 0
    // Predicated region
    $region2: #{tpu_custom_call.1} parent=1 // pred_check
      _
    $region3: #{tpu_custom_call.1} parent=1 // pred_check_branch
      %11 = sbr.rel (0) target = $region5
    $region4: #{tpu_custom_call.1} parent=1 // pred_region
      %s13 = ssub.s32 64, 64
      %14 = vsyncadd [#allocation3], %s13
      %s16 = sshll.u32 [#allocation2], 4
      %s17 = int_to_ptr.vmem [resolvable:$true] %s16
      %19 = dma.hbm_to_vmem [thread:$0]  %s0, 64, %s17, [#allocation3]
    $region5: #{tpu_custom_call.1} parent=1 // pred_fallthru
      _
    // Predicated region
    $region6: #{tpu_custom_call.1} parent=1 // pred_check
      _
    $region7: #{tpu_custom_call.1} parent=1 // pred_check_branch
      %21 = sbr.rel (0) target = $region9
    $region8: #{tpu_custom_call.1} parent=1 // pred_region
      %s23 = ssub.s32 256, 256
      %24 = vsyncadd [#allocation6], %s23
      %s25 = sshll.u32 [#allocation5], 4
      %s26 = int_to_ptr.vmem [resolvable:$true] %s25
      %31 = dma.hbm_to_vmem [thread:$0]  %s1, 256, %s26, [#allocation6], 128, 128, 8
    $region9: #{tpu_custom_call.1} parent=1 // pred_fallthru
      _
    // Predicated region
    $region10: #{tpu_custom_call.1} parent=1 // pred_check
      _
    $region11: #{tpu_custom_call.1} parent=1 // pred_check_branch
      %33 = sbr.rel (0) target = $region13
    $region12: #{tpu_custom_call.1} parent=1 // pred_region
      %34 = dma.done [#allocation3], 64
    $region13: #{tpu_custom_call.1} parent=1 // pred_fallthru
      _
    // Predicated region
    $region14: #{tpu_custom_call.1} parent=1 // pred_check
      _
    $region15: #{tpu_custom_call.1} parent=1 // pred_check_branch
      %36 = sbr.rel (0) target = $region17
    $region16: #{tpu_custom_call.1} parent=1 // pred_region
      %37 = dma.done [#allocation6], 256
    $region17: #{tpu_custom_call.1} parent=1 // pred_fallthru
      _
    %v38 = vld [vmem:[#allocation2] sm:$0xf]
    %v39 = vlaneseq
    %v40 = vshrl.u32 %v39, 7
    %v41 = vadd.s32 %v40, 8
    %v42 = vadd.s32 %v40, 16
    %v43 = vadd.s32 %v40, 24
    %v44 = vadd.s32 %v40, 32
    %v45 = vadd.s32 %v40, 40
    %v46 = vadd.s32 %v40, 48
    %v47 = vadd.s32 %v40, 56
    %v48 = vadd.s32 %v40, 64
    %v49 = vadd.s32 %v40, 72
    %v50 = vlaneseq
    %v51 = vshrl.u32 %v50, 7
    %v52 = vsub.s32 0, %v51
    %v53 = vrot.slane %v38, %v52
    %vm54 = vcmp.eq.s32.totalorder %v40, %v53
    %vm55 = vcmp.eq.s32.totalorder %v41, %v53
    %vm56 = vcmp.eq.s32.totalorder %v42, %v53
    %vm57 = vcmp.eq.s32.totalorder %v43, %v53
    %vm58 = vcmp.eq.s32.totalorder %v44, %v53
    %vm59 = vcmp.eq.s32.totalorder %v45, %v53
    %vm60 = vcmp.eq.s32.totalorder %v46, %v53
    %vm61 = vcmp.eq.s32.totalorder %v47, %v53
    %vm62 = vcmp.eq.s32.totalorder %v48, %v53
    %vm63 = vcmp.eq.s32.totalorder %v49, %v53
    %v64 = vsel %vm54, 1, 0
    %v65 = vsel %vm55, 1, 0
    %v66 = vsel %vm56, 1, 0
    %v67 = vsel %vm57, 1, 0
    %v68 = vsel %vm58, 1, 0
    %v69 = vsel %vm59, 1, 0
    %v70 = vsel %vm60, 1, 0
    %v71 = vsel %vm61, 1, 0
    %v72 = vsel %vm62, 1, 0
    %v73 = vsel %vm63, 1, 0
    %v74 = vcvt.s32.f32 %v64
    %v75 = vcvt.s32.f32 %v65
    %v76 = vcvt.s32.f32 %v66
    %v77 = vcvt.s32.f32 %v67
    %v78 = vcvt.s32.f32 %v68
    %v79 = vcvt.s32.f32 %v69
    %v80 = vcvt.s32.f32 %v70
    %v81 = vcvt.s32.f32 %v71
    %v82 = vcvt.s32.f32 %v72
    %v83 = vcvt.s32.f32 %v73
    %v84 = vlaneseq
    %v85 = vshrl.u32 %v84, 7
    %v86 = vsub.s32 1, %v85
    %v87 = vrot.slane %v38, %v86
    %vm88 = vcmp.eq.s32.totalorder %v40, %v87
    %vm89 = vcmp.eq.s32.totalorder %v41, %v87
    %vm90 = vcmp.eq.s32.totalorder %v42, %v87
    %vm91 = vcmp.eq.s32.totalorder %v43, %v87
    %vm92 = vcmp.eq.s32.totalorder %v44, %v87
    %vm93 = vcmp.eq.s32.totalorder %v45, %v87
    %vm94 = vcmp.eq.s32.totalorder %v46, %v87
    %vm95 = vcmp.eq.s32.totalorder %v47, %v87
    %vm96 = vcmp.eq.s32.totalorder %v48, %v87
    %vm97 = vcmp.eq.s32.totalorder %v49, %v87
    %v98 = vsel %vm88, 1, 0
    %v99 = vsel %vm89, 1, 0
    %v100 = vsel %vm90, 1, 0
    %v101 = vsel %vm91, 1, 0
    %v102 = vsel %vm92, 1, 0
    %v103 = vsel %vm93, 1, 0
    %v104 = vsel %vm94, 1, 0
    %v105 = vsel %vm95, 1, 0
    %v106 = vsel %vm96, 1, 0
    %v107 = vsel %vm97, 1, 0
    %v108 = vcvt.s32.f32 %v98
    %v109 = vcvt.s32.f32 %v99
    %v110 = vcvt.s32.f32 %v100
    %v111 = vcvt.s32.f32 %v101
    %v112 = vcvt.s32.f32 %v102
    %v113 = vcvt.s32.f32 %v103
    %v114 = vcvt.s32.f32 %v104
    %v115 = vcvt.s32.f32 %v105
    %v116 = vcvt.s32.f32 %v106
    %v117 = vcvt.s32.f32 %v107
    %v118 = vadd.f32 %v74, %v108
    %v119 = vadd.f32 %v75, %v109
    %v120 = vadd.f32 %v76, %v110
    %v121 = vadd.f32 %v77, %v111
    %v122 = vadd.f32 %v78, %v112
    %v123 = vadd.f32 %v79, %v113
    %v124 = vadd.f32 %v80, %v114
    %v125 = vadd.f32 %v81, %v115
    %v126 = vadd.f32 %v82, %v116
    %v127 = vadd.f32 %v83, %v117
    %v128 = vlaneseq
    %v129 = vshrl.u32 %v128, 7
    %v130 = vsub.s32 2, %v129
    %v131 = vrot.slane %v38, %v130
    %vm132 = vcmp.eq.s32.totalorder %v40, %v131
    %vm133 = vcmp.eq.s32.totalorder %v41, %v131
    %vm134 = vcmp.eq.s32.totalorder %v42, %v131
    %vm135 = vcmp.eq.s32.totalorder %v43, %v131
    %vm136 = vcmp.eq.s32.totalorder %v44, %v131
    %vm137 = vcmp.eq.s32.totalorder %v45, %v131
    %vm138 = vcmp.eq.s32.totalorder %v46, %v131
    %vm139 = vcmp.eq.s32.totalorder %v47, %v131
    %vm140 = vcmp.eq.s32.totalorder %v48, %v131
    %vm141 = vcmp.eq.s32.totalorder %v49, %v131
    %v142 = vsel %vm132, 1, 0
    %v143 = vsel %vm133, 1, 0
    %v144 = vsel %vm134, 1, 0
    %v145 = vsel %vm135, 1, 0
    %v146 = vsel %vm136, 1, 0
    %v147 = vsel %vm137, 1, 0
    %v148 = vsel %vm138, 1, 0
    %v149 = vsel %vm139, 1, 0
    %v150 = vsel %vm140, 1, 0
    %v151 = vsel %vm141, 1, 0
    %v152 = vcvt.s32.f32 %v142
    %v153 = vcvt.s32.f32 %v143
    %v154 = vcvt.s32.f32 %v144
    %v155 = vcvt.s32.f32 %v145
    %v156 = vcvt.s32.f32 %v146
    %v157 = vcvt.s32.f32 %v147
    %v158 = vcvt.s32.f32 %v148
    %v159 = vcvt.s32.f32 %v149
    %v160 = vcvt.s32.f32 %v150
    %v161 = vcvt.s32.f32 %v151
    %v162 = vadd.f32 %v118, %v152
    %v163 = vadd.f32 %v119, %v153
    %v164 = vadd.f32 %v120, %v154
    %v165 = vadd.f32 %v121, %v155
    %v166 = vadd.f32 %v122, %v156
    %v167 = vadd.f32 %v123, %v157
    %v168 = vadd.f32 %v124, %v158
    %v169 = vadd.f32 %v125, %v159
    %v170 = vadd.f32 %v126, %v160
    %v171 = vadd.f32 %v127, %v161
    %v172 = vlaneseq
    %v173 = vshrl.u32 %v172, 7
    %v174 = vsub.s32 3, %v173
    %v175 = vrot.slane %v38, %v174
    %vm176 = vcmp.eq.s32.totalorder %v40, %v175
    %vm177 = vcmp.eq.s32.totalorder %v41, %v175
    %vm178 = vcmp.eq.s32.totalorder %v42, %v175
    %vm179 = vcmp.eq.s32.totalorder %v43, %v175
    %vm180 = vcmp.eq.s32.totalorder %v44, %v175
    %vm181 = vcmp.eq.s32.totalorder %v45, %v175
    %vm182 = vcmp.eq.s32.totalorder %v46, %v175
    %vm183 = vcmp.eq.s32.totalorder %v47, %v175
    %vm184 = vcmp.eq.s32.totalorder %v48, %v175
    %vm185 = vcmp.eq.s32.totalorder %v49, %v175
    %v186 = vsel %vm176, 1, 0
    %v187 = vsel %vm177, 1, 0
    %v188 = vsel %vm178, 1, 0
    %v189 = vsel %vm179, 1, 0
    %v190 = vsel %vm180, 1, 0
    %v191 = vsel %vm181, 1, 0
    %v192 = vsel %vm182, 1, 0
    %v193 = vsel %vm183, 1, 0
    %v194 = vsel %vm184, 1, 0
    %v195 = vsel %vm185, 1, 0
    %v196 = vcvt.s32.f32 %v186
    %v197 = vcvt.s32.f32 %v187
    %v198 = vcvt.s32.f32 %v188
    %v199 = vcvt.s32.f32 %v189
    %v200 = vcvt.s32.f32 %v190
    %v201 = vcvt.s32.f32 %v191
    %v202 = vcvt.s32.f32 %v192
    %v203 = vcvt.s32.f32 %v193
    %v204 = vcvt.s32.f32 %v194
    %v205 = vcvt.s32.f32 %v195
    %v206 = vadd.f32 %v162, %v196
    %v207 = vadd.f32 %v163, %v197
    %v208 = vadd.f32 %v164, %v198
    %v209 = vadd.f32 %v165, %v199
    %v210 = vadd.f32 %v166, %v200
    %v211 = vadd.f32 %v167, %v201
    %v212 = vadd.f32 %v168, %v202
    %v213 = vadd.f32 %v169, %v203
    %v214 = vadd.f32 %v170, %v204
    %v215 = vadd.f32 %v171, %v205
    %v216 = vld [vmem:[#allocation5] sm:$0xff]
    %v217 = vld [vmem:[#allocation5 + $0x8] sm:$0x3]
    %vm218 = vcmask 621568
    %v220 = vsel %vm218, %v216, 0
    %v223 = vsel %vm218, %v217, 0
    %vm225 = vcmask 1043456
    %v227 = vsel %vm225, %v215, 0
    %229 = vmatprep.subr.mxu0 0.0
    %230 = vmatpush1.msra.mxu0 %v206
    %231 = vmatprep.subr.mxu0 0.0
    %232 = vmatpush1.msra.mxu0 %v207
    %233 = vmatprep.subr.mxu0 0.0
    %234 = vmatpush1.msra.mxu0 %v208
    %235 = vmatprep.subr.mxu0 0.0
    %236 = vmatpush1.msra.mxu0 %v209
    %237 = vmatprep.subr.mxu0 0.0
    %238 = vmatpush1.msra.mxu0 %v210
    %239 = vmatprep.subr.mxu0 0.0
    %240 = vmatpush1.msra.mxu0 %v211
    %241 = vmatprep.subr.mxu0 0.0
    %242 = vmatpush1.msra.mxu0 %v212
    %243 = vmatprep.subr.mxu0 0.0
    %244 = vmatpush1.msra.mxu0 %v213
    %245 = vmatprep.subr.mxu0 0.0
    %246 = vmatpush1.msra.mxu0 %v214
    %247 = vmatprep.subr.mxu0 0.0
    %248 = vmatpush1.msra.mxu0 %v227
    %249 = vmatprep.subr.mxu0 0.0
    %250 = vmatpush1.msra.mxu0 0.0
    %251 = vmatprep.subr.mxu0 0.0
    %252 = vmatpush1.msra.mxu0 0.0
    %253 = vmatprep.subr.mxu0 0.0
    %254 = vmatpush1.msra.mxu0 0.0
    %255 = vmatprep.subr.mxu0 0.0
    %256 = vmatpush1.msra.mxu0 0.0
    %257 = vmatprep.subr.mxu0 0.0
    %258 = vmatpush1.msra.mxu0 0.0
    %259 = vmatprep.subr.mxu0 0.0
    %260 = vmatpush1.msra.mxu0 0.0
    %261 = vmatprep.subr.mxu0 0.0
    %262 = vmatpush1.msra.mxu0 0.0
    %263 = vmatprep.subr.mxu0 0.0
    %264 = vmatpush1.msra.mxu0 0.0
    %265 = vmatprep.subr.mxu0 0.0
    %266 = vmatpush1.msra.mxu0 0.0
    %267 = vmatprep.subr.mxu0 0.0
    %268 = vmatpush1.msra.mxu0 0.0
    %269 = vmatprep.subr.mxu0 0.0
    %270 = vmatpush1.msra.mxu0 0.0
    %271 = vmatprep.subr.mxu0 0.0
    %272 = vmatpush1.msra.mxu0 0.0
    %273 = vmatprep.subr.mxu0 0.0
    %274 = vmatpush1.msra.mxu0 0.0
    %275 = vmatprep.subr.mxu0 0.0
    %276 = vmatpush1.msra.mxu0 0.0
    %277 = vmatprep.subr.mxu0 0.0
    %278 = vmatpush1.msra.mxu0 0.0
    %279 = vmatprep.subr.mxu0 0.0
    %280 = vmatpush1.msra.mxu0 0.0
    %281 = vmatprep.subr.mxu0 0.0
    %282 = vmatpush1.msra.mxu0 0.0
    %283 = vmatprep.subr.mxu0 0.0
    %284 = vmatpush1.msra.mxu0 0.0
    %285 = vmatprep.subr.mxu0 0.0
    %286 = vmatpush1.msra.mxu0 0.0
    %287 = vmatprep.subr.mxu0 0.0
    %288 = vmatpush1.msra.mxu0 0.0
    %289 = vmatprep.subr.mxu0 0.0
    %290 = vmatpush1.msra.mxu0 0.0
    %291 = vmatprep.subr.mxu0 0.0
    %292 = vmatpush1.msra.mxu0 0.0
    %293 = vmatprep.mubr.f32.mxu0 0.0
    %294 = vmatmul.mubr.f32.gmra.mrb[0].mxu0 %v220
    %v295 = vpop.f32.mrb[0].mxu0
    %v296 = vadd.f32 0.0, %v295
    %v297 = vpop.f32.mrb[0].mxu0
    %298 = vmatprep.mubr.f32.mxu0 0.0
    %299 = vmatmul.mubr.f32.gmra.mrb[0].mxu0 %v223
    %v300 = vpop.f32.mrb[0].mxu0
    %v301 = vadd.f32 0.0, %v300
    %v302 = vpop.f32.mrb[0].mxu0
    %303 = vdwg.mxu0
    %vm304 = vcmask 130048
    %305 = vst.msk [vmem:[#allocation7] sm:$0xff] %vm304, %v296
    %vm306 = vcmask 123904
    %307 = vst.msk [vmem:[#allocation7 + $0x8] sm:$0x3] %vm306, %v301
    // Predicated region
    $region18: #{tpu_custom_call.1} parent=1 // pred_check
      _
    $region19: #{tpu_custom_call.1} parent=1 // pred_check_branch
      %309 = sbr.rel (0) target = $region21
    $region20: #{tpu_custom_call.1} parent=1 // pred_region
      %s311 = ssub.s32 256, 256
      %312 = vsyncadd [#allocation4], %s311
      %s313 = sshll.u32 [#allocation7], 4
      %s314 = int_to_ptr.vmem [resolvable:$true] %s313
      %319 = dma.vmem_to_hbm [thread:$0]  %s314, 256, %s2, [#allocation4], 128, 128, 8
    $region21: #{tpu_custom_call.1} parent=1 // pred_fallthru
      _
    // Predicated region
    $region22: #{tpu_custom_call.1} parent=1 // pred_check
      _
    $region23: #{tpu_custom_call.1} parent=1 // pred_check_branch
      %321 = sbr.rel (0) target = $region25
    $region24: #{tpu_custom_call.1} parent=1 // pred_region
      %322 = dma.done [#allocation4], 256
    $region25: #{tpu_custom_call.1} parent=1 // pred_fallthru
      _
    %323 = vsyncpa [#allocation3], 1
    %324 = vsyncpa [#allocation6], 1
    %325 = vsyncpa [#allocation4], 1

</llo_original>
